<compile_context>
chip_gen: v6e
topology: v6e:2x2x1
jax: 0.10.0
libtpu: 0.0.40
codegen_flags: <defaults>
</compile_context>

<pallas_src>
import functools

import jax
import jax.numpy as jnp
from jax.experimental import pallas as pl
from jax.experimental.pallas import tpu as pltpu


def _round_up(x, m):
    return ((x + m - 1) // m) * m


def _cdiv(a, b):
    return -(-a // b)


def _vmem_capacity_bytes():
    """Physical VMEM per TensorCore, with a conservative fallback."""
    try:
        info = pltpu.get_tpu_info()
        cap = int(getattr(info, "vmem_capacity_bytes"))
        if cap > 0:
            return cap
    except Exception:
        pass
    # Conservative default: assume the smallest generation (v7x, 64 MiB).
    return 64 * 1024 * 1024


def _focal_loss_kernel(logits_ref, targets_ref, partial_ref, *,
                       alpha, gamma, n_rows, block_rows):
    # logits_ref:  (TN, C) native dtype
    # targets_ref: (TN, 1) int32
    # partial_ref: (1, 8, 128) f32 -- per-block partial sum (lane-dense tile)
    i = pl.program_id(0)

    logits = logits_ref[...].astype(jnp.float32)              # (TN, C)
    targets = targets_ref[...]                                 # (TN, 1) int32
    tn, c = logits.shape

    # Numerically stable log-softmax pieces; `shifted` is reused for the
    # one-hot target gather (saves one full (TN, C) VPU pass).
    m = jnp.max(logits, axis=-1, keepdims=True)                # (TN, 1)
    shifted = logits - m                                       # (TN, C), <= 0
    sumexp = jnp.sum(jnp.exp(shifted), axis=-1, keepdims=True)  # (TN, 1)

    col = jax.lax.broadcasted_iota(jnp.int32, (tn, c), 1)      # (TN, C)
    onehot = col == targets                                    # (TN, C) bool
    tgt_shift = jnp.sum(jnp.where(onehot, shifted, 0.0),
                        axis=-1, keepdims=True)                # (TN, 1)

    ce = jnp.log(sumexp) - tgt_shift                           # (TN, 1), >= 0
    pt = jnp.exp(-ce)                                          # (TN, 1), (0, 1]

    base = jnp.maximum(1.0 - pt, 0.0)                          # guard fp error
    g = float(gamma)
    if g == int(g) and 0 <= int(g) <= 8:
        # integer exponent -> unrolled VPU multiplies (no exp/log pow chain)
        w = jnp.ones_like(base)
        for _ in range(int(g)):
            w = w * base
    else:
        w = base ** g
    focal = jnp.float32(alpha) * w * ce                        # (TN, 1)

    # Mask rows beyond the true N in the final (padded) block. Keep this a
    # select (jnp.where), not a multiply-by-mask: padded rows may hold NaN.
    row = jax.lax.broadcasted_iota(jnp.int32, (tn, 1), 0)
    valid = (i * block_rows + row) < n_rows
    partial = jnp.sum(jnp.where(valid, focal, 0.0))

    # Lane-dense (8, 128) store of the partial; wrapper reads [:, 0, 0].
    partial_ref[...] = jnp.broadcast_to(partial, partial_ref.shape)


def focal_loss(logits, targets, alpha=1.0, gamma=2.0, reduction="mean"):
    """Focal loss computed in a row-tiled Pallas TPU kernel.

    logits:  (N, C) float array (any float dtype; cast to f32 in-kernel)
    targets: (N,)   int array of class indices
    returns: scalar float32 (reduction='mean' or 'sum')
    """
    n, c = logits.shape
    targets2d = targets.astype(jnp.int32).reshape(n, 1)

    itemsize = jnp.dtype(logits.dtype).itemsize
    # Dtype-native sublane multiple: 8 for f32, 16 for bf16, 32 for int8/fp8.
    sub = max(8, 32 // max(1, itemsize))

    # Per-generation budgets:
    #   v7x  (64 MiB physical VMEM): ~6 MiB per logits buffer, limit 48 MiB
    #   v5e/v6e (128 MiB physical):  ~12 MiB per logits buffer, limit 64 MiB
    vmem_cap = _vmem_capacity_bytes()
    if vmem_cap >= 100 * 1024 * 1024:
        buf_budget = 12 * 1024 * 1024
        vmem_limit = 64 * 1024 * 1024
    else:
        buf_budget = 6 * 1024 * 1024
        vmem_limit = 48 * 1024 * 1024

    # Bytes per row in VMEM: logits row (C * itemsize) plus the lane-padded
    # int32 targets row ((TN,1) pads to (TN,128) lanes -> 512 B/row/buffer).
    bytes_per_row = c * itemsize + 512
    tn = buf_budget // bytes_per_row
    tn = max(sub, (tn // sub) * sub)

    # Don't exceed the (padded) problem size, and prefer >= 2 blocks so the
    # "parallel" grid axis can be sharded across both v7x TensorCores.
    tn = min(tn, _round_up(n, sub))
    tn = min(tn, max(sub, _round_up(_cdiv(n, 2), sub)))
    num_blocks = _cdiv(n, tn)

    kernel = functools.partial(
        _focal_loss_kernel,
        alpha=float(alpha), gamma=float(gamma),
        n_rows=n, block_rows=tn)

    cost = pl.CostEstimate(
        flops=int(6 * n * c),
        transcendentals=int(n * c + 2 * n),
        bytes_accessed=int(n * c * itemsize + 4 * n
                           + 8 * 128 * 4 * num_blocks),
    )

    partials = pl.pallas_call(
        kernel,
        out_shape=jax.ShapeDtypeStruct((num_blocks, 8, 128), jnp.float32),
        grid=(num_blocks,),
        in_specs=[
            pl.BlockSpec((tn, c), lambda i: (i, 0)),   # logits row tile
            pl.BlockSpec((tn, 1), lambda i: (i, 0)),   # target indices tile
        ],
        out_specs=pl.BlockSpec((1, 8, 128), lambda i: (i, 0, 0)),
        compiler_params=pltpu.CompilerParams(
            dimension_semantics=("parallel",),
            vmem_limit_bytes=vmem_limit),
        cost_estimate=cost,
    )(logits, targets2d)

    total = jnp.sum(partials[:, 0, 0])
    if reduction == "mean":
        return total * jnp.float32(1.0 / n)   # fold 1/N as a constant multiply
    elif reduction == "sum":
        return total
    else:
        # TODO(synk): reduction='none' (per-sample vector output) not exposed
        # by this scalar-reduction kernel; only 'mean'/'sum' are supported.
        raise NotImplementedError("reduction='none' not implemented")


def _focal_loss_ref(logits, targets, alpha=1.0, gamma=2.0, reduction="mean"):
    # plain-JAX reference mirroring F.cross_entropy + focal weighting
    logits = logits.astype(jnp.float32)
    logz = jax.nn.logsumexp(logits, axis=-1)
    tgt = jnp.take_along_axis(logits, targets[:, None].astype(jnp.int32),
                              axis=-1)[:, 0]
    ce = logz - tgt
    pt = jnp.exp(-ce)
    fl = alpha * (1.0 - pt) ** gamma * ce
    return jnp.mean(fl) if reduction == "mean" else jnp.sum(fl)


if __name__ == "__main__":
    key = jax.random.PRNGKey(0)
    k1, k2, k3, k4 = jax.random.split(key, 4)

    # Small shapes consistent with a classification head.
    N, C = 8, 32
    logits = jax.random.normal(k1, (N, C), dtype=jnp.float32)
    targets = jax.random.randint(k2, (N,), 0, C, dtype=jnp.int32)

    loss = focal_loss(logits, targets, alpha=1.0, gamma=2.0)
    loss = jax.block_until_ready(loss)
    ref = _focal_loss_ref(logits, targets, alpha=1.0, gamma=2.0)
    assert jnp.allclose(loss, ref, rtol=1e-5, atol=1e-6), (loss, ref)

    # Tail-masking path: N not a multiple of the row tile (2 blocks, padded
    # last block) — exercises the jnp.where row mask.
    N2 = 10
    logits2 = jax.random.normal(k3, (N2, C), dtype=jnp.float32)
    targets2 = jax.random.randint(k4, (N2,), 0, C, dtype=jnp.int32)
    loss2 = focal_loss(logits2, targets2, alpha=1.0, gamma=2.0)
    loss2 = jax.block_until_ready(loss2)
    ref2 = _focal_loss_ref(logits2, targets2, alpha=1.0, gamma=2.0)
    assert jnp.allclose(loss2, ref2, rtol=1e-5, atol=1e-6), (loss2, ref2)

    print("KERNEL_OK")
</pallas_src>

<mosaic_0001>
module attributes {stable_mosaic.version = 11 : i64} {
  func.func @_focal_loss_kernel(%arg0: i32, %arg1: memref<8x32xf32, #tpu.memory_space<vmem>>, %arg2: memref<8x1xi32, #tpu.memory_space<vmem>>, %arg3: memref<1x8x128xf32, #tpu.memory_space<vmem>>) attributes {dimension_semantics = [#tpu.dimension_semantics<parallel>], iteration_bounds = array<i64: 1>, scalar_prefetch = 0 : i64, scratch_operands = 0 : i64, tpu.core_type = #tpu.core_type<tc>, window_params = [{transform_indices = @transform_0, window_bounds = array<i64: 8, 32>}, {transform_indices = @transform_1, window_bounds = array<i64: 8, 1>}, {transform_indices = @transform_2, window_bounds = array<i64: 1, 8, 128>}]} {
    %c0 = arith.constant 0 : index
    %c0_0 = arith.constant 0 : index
    %0 = vector.load %arg1[%c0, %c0_0] : memref<8x32xf32, #tpu.memory_space<vmem>>, vector<8x32xf32>
    %c0_1 = arith.constant 0 : index
    %c0_2 = arith.constant 0 : index
    %1 = vector.load %arg2[%c0_1, %c0_2] : memref<8x1xi32, #tpu.memory_space<vmem>>, vector<8x1xi32>
    %cst = arith.constant dense<0xFF800000> : vector<8xf32>
    %2 = vector.multi_reduction <maximumf>, %0, %cst [1] : vector<8x32xf32> to vector<8xf32>
    %3 = vector.shape_cast %2 : vector<8xf32> to vector<8x1xf32>
    %4 = vector.broadcast %3 : vector<8x1xf32> to vector<8x32xf32>
    %5 = arith.subf %0, %4 : vector<8x32xf32>
    %6 = math.exp %5 : vector<8x32xf32>
    %cst_3 = arith.constant dense<0.000000e+00> : vector<8xf32>
    %7 = vector.multi_reduction <add>, %6, %cst_3 [1] : vector<8x32xf32> to vector<8xf32>
    %8 = vector.shape_cast %7 : vector<8xf32> to vector<8x1xf32>
    %9 = tpu.iota {dimensions = array<i32: 1>} : vector<8x32xi32>
    %10 = vector.broadcast %1 : vector<8x1xi32> to vector<8x32xi32>
    %11 = arith.cmpi eq, %9, %10 : vector<8x32xi32>
    %cst_4 = arith.constant 0.000000e+00 : f32
    %12 = vector.broadcast %cst_4 : f32 to vector<8x32xf32>
    %13 = arith.select %11, %5, %12 : vector<8x32xi1>, vector<8x32xf32>
    %cst_5 = arith.constant dense<0.000000e+00> : vector<8xf32>
    %14 = vector.multi_reduction <add>, %13, %cst_5 [1] : vector<8x32xf32> to vector<8xf32>
    %15 = vector.shape_cast %14 : vector<8xf32> to vector<8x1xf32>
    %16 = math.log %8 : vector<8x1xf32>
    %17 = arith.subf %16, %15 : vector<8x1xf32>
    %cst_6 = arith.constant 0.000000e+00 : f32
    %18 = vector.broadcast %cst_6 : f32 to vector<8x1xf32>
    %19 = arith.subf %18, %17 : vector<8x1xf32>
    %20 = math.exp %19 : vector<8x1xf32>
    %cst_7 = arith.constant 1.000000e+00 : f32
    %21 = vector.broadcast %cst_7 : f32 to vector<8x1xf32>
    %22 = arith.subf %21, %20 : vector<8x1xf32>
    %cst_8 = arith.constant 0.000000e+00 : f32
    %23 = vector.broadcast %cst_8 : f32 to vector<8x1xf32>
    %24 = arith.maximumf %22, %23 : vector<8x1xf32>
    %cst_9 = arith.constant 1.000000e+00 : f32
    %25 = vector.broadcast %cst_9 : f32 to vector<8x1xf32>
    %26 = arith.mulf %25, %24 : vector<8x1xf32>
    %27 = arith.mulf %26, %24 : vector<8x1xf32>
    %cst_10 = arith.constant 1.000000e+00 : f32
    %28 = vector.broadcast %cst_10 : f32 to vector<8x1xf32>
    %29 = arith.mulf %28, %27 : vector<8x1xf32>
    %30 = arith.mulf %29, %17 : vector<8x1xf32>
    %31 = tpu.iota {dimensions = array<i32: 0>} : vector<8x1xi32>
    %c8_i32 = arith.constant 8 : i32
    %32 = arith.muli %arg0, %c8_i32 : i32
    %33 = vector.broadcast %32 : i32 to vector<8x1xi32>
    %34 = arith.addi %33, %31 : vector<8x1xi32>
    %c8_i32_11 = arith.constant 8 : i32
    %35 = vector.broadcast %c8_i32_11 : i32 to vector<8x1xi32>
    %36 = arith.cmpi slt, %34, %35 : vector<8x1xi32>
    %cst_12 = arith.constant 0.000000e+00 : f32
    %37 = vector.broadcast %cst_12 : f32 to vector<8x1xf32>
    %38 = arith.select %36, %30, %37 : vector<8x1xi1>, vector<8x1xf32>
    %39 = vector.shape_cast %38 : vector<8x1xf32> to vector<1x8x1xf32>
    %cst_13 = arith.constant dense<0.000000e+00> : vector<1xf32>
    %40 = vector.multi_reduction <add>, %39, %cst_13 [1, 2] : vector<1x8x1xf32> to vector<1xf32>
    %41 = vector.shape_cast %40 : vector<1xf32> to vector<1x1x1xf32>
    %42 = vector.extract %41[0, 0, 0] : f32 from vector<1x1x1xf32>
    %43 = vector.broadcast %42 : f32 to vector<1x8x128xf32>
    %c0_14 = arith.constant 0 : index
    %c0_15 = arith.constant 0 : index
    %c0_16 = arith.constant 0 : index
    %44 = vector.load %arg3[%c0_14, %c0_15, %c0_16] : memref<1x8x128xf32, #tpu.memory_space<vmem>>, vector<1x8x128xf32>
    tpu.vector_store %arg3[%c0_14, %c0_15, %c0_16], %43 {strides = array<i32>} : memref<1x8x128xf32, #tpu.memory_space<vmem>>, vector<1x8x128xf32>,
    return
  }
  func.func @transform_0(%arg0: i32) -> (i32, i32) {
    %c0_i32 = arith.constant 0 : i32
    %c0_i32_0 = arith.constant 0 : i32
    return %arg0, %c0_i32 : i32, i32
  }
  func.func @transform_1(%arg0: i32) -> (i32, i32) {
    %c0_i32 = arith.constant 0 : i32
    %c0_i32_0 = arith.constant 0 : i32
    return %arg0, %c0_i32 : i32, i32
  }
  func.func @transform_2(%arg0: i32) -> (i32, i32, i32) {
    %c0_i32 = arith.constant 0 : i32
    %c0_i32_0 = arith.constant 0 : i32
    %c0_i32_1 = arith.constant 0 : i32
    return %arg0, %c0_i32, %c0_i32_0 : i32, i32, i32
  }
}

</mosaic_0001>

<llo_original>
// kernel: tpu_custom_call.1
$region0: #{tpu_custom_call.1}
  #allocation0 [shape = 'u32[]', space=smem, size = 0x4, offset = 0x4, fixed_abs, tag = 'smem constant byte address 0x4 - core index']
  #allocation1 [shape = 'u32[144,128]{1,0:T(1,128)}', space=vmem, size = 0x12000, scoped, tag = 'internal scratch']
  %s0 = inlined_call_operand.vmem [shape: f32[8,32], index: 0, kind: input, shape index: {}]
  %s1 = inlined_call_operand.vmem [shape: s32[8,1], index: 1, kind: input, shape index: {}]
  %s2 = inlined_call_operand.hbm [shape: f32[1,8,128], index: 2, kind: output, shape index: {}]
  %s3 = sld [smem:[#allocation0]]
  $region18: #{tpu_custom_call.1} parent=0
    _
  %s5 = ssub.s32 1, %s3
  %s6 = scalar_select 0, %s5, %s3
  $region1: #{tpu_custom_call.1} parent=0
    #allocation2 [shape = 'u8[4096]{0}', space=vmem, size = 0x1000, scoped, tag = 'output window, operand 0, single buffered']
    #allocation3 [shape = 's32[1]{0}', space=sflag, size = 0x4, scoped, tag = 'scoped memory for tpu_custom_call.1']
    %7 = vsyncpa [#allocation3], 0
    // Predicated region
    $region2: #{tpu_custom_call.1} parent=1 // pred_check
      _
    $region3: #{tpu_custom_call.1} parent=1 // pred_check_branch
      %9 = sbr.rel (0) target = $region5
    $region4: #{tpu_custom_call.1} parent=1 // pred_region
      _
    $region5: #{tpu_custom_call.1} parent=1 // pred_fallthru
      _
    // Predicated region
    $region6: #{tpu_custom_call.1} parent=1 // pred_check
      _
    $region7: #{tpu_custom_call.1} parent=1 // pred_check_branch
      %11 = sbr.rel (0) target = $region9
    $region8: #{tpu_custom_call.1} parent=1 // pred_region
      _
    $region9: #{tpu_custom_call.1} parent=1 // pred_fallthru
      _
    %v12 = vld [vmem:[%s0] sm:$0xff]
    %v13 = vld [vmem:[%s1] sm:$0xff]
    %vm14 = vcmask 261120
    %v15 = vsel %vm14, %v12, -inf
    %16 = vmax.xlane.f32.xlu0 %v15
    %v17 = vpop.xlane.xlu0 %16
    %v18 = vsub.f32 %v12, %v17
    %v19 = vmul.f32 %v18, 1.442695
    %v20 = vpow.pop %v19
    %v21 = vsel %vm14, %v20, 0.0
    %22 = vadd.xlane.f32.xlu0 %v21
    %v23 = vpop.xlane.xlu0 %22
    %v24 = vlaneseq
    %v25 = vand.u32 %v24, 127
    %26 = vset.pattern.permute.xlu0 0
    %27 = vperm.xlu0 %26, %v13
    %v28 = vpop.permute.xlu0 %27
    %vm29 = vcmp.eq.s32.totalorder %v25, %v28
    %v30 = vsel %vm29, %v18, 0.0
    %v31 = vsel %vm14, %v30, 0.0
    %32 = vadd.xlane.f32.xlu0 %v31
    %v33 = vpop.xlane.xlu0 %32
    %v34 = vlog2.pop %v23
    %v35 = vmul.f32 %v34, 0.6931472
    %v36 = vsub.f32 %v35, %v33
    %v37 = vsub.f32 0.0, %v36
    %v38 = vmul.f32 %v37, 1.442695
    %v39 = vpow.pop %v38
    %v40 = vsub.f32 1.0, %v39
    %v41 = vmax.f32 %v40, 0.0
    %v42 = vmul.f32 %v41, %v41
    %v43 = vmul.f32 %v42, %v36
    %v44 = vlaneseq
    %v45 = vshrl.u32 %v44, 7
    %s46 = smul.u32 0, 8
    %v47 = vstv %s46
    %v48 = vadd.s32 %v47, %v45
    %vm49 = vcmp.lt.s32.totalorder %v48, 8
    %v50 = vsel %vm49, %v43, 0.0
    %vm51 = vcmask 7168
    %v52 = vsel %vm51, %v50, 0.0
    %53 = vadd.xlane.f32.xlu0 %v52
    %v54 = vpop.xlane.xlu0 %53
    %v55 = vrot.slane %v54, 4
    %v56 = vadd.f32 %v54, %v55
    %v57 = vrot.slane %v56, 2
    %v58 = vadd.f32 %v56, %v57
    %v59 = vrot.slane %v58, 1
    %v60 = vadd.f32 %v58, %v59
    %s61 = vtos %v60
    %v62 = vstv %s61
    %63 = vst [vmem:[#allocation2] sm:$0xff] %v62
    // Predicated region
    $region10: #{tpu_custom_call.1} parent=1 // pred_check
      _
    $region11: #{tpu_custom_call.1} parent=1 // pred_check_branch
      %65 = sbr.rel (0) target = $region13
    $region12: #{tpu_custom_call.1} parent=1 // pred_region
      %s67 = ssub.s32 128, 128
      %68 = vsyncadd [#allocation3], %s67
      %s70 = sshll.u32 [#allocation2], 4
      %s71 = int_to_ptr.vmem [resolvable:$true] %s70
      %73 = dma.vmem_to_hbm [thread:$0]  %s71, 128, %s2, [#allocation3]
    $region13: #{tpu_custom_call.1} parent=1 // pred_fallthru
      _
    // Predicated region
    $region14: #{tpu_custom_call.1} parent=1 // pred_check
      _
    $region15: #{tpu_custom_call.1} parent=1 // pred_check_branch
      %75 = sbr.rel (0) target = $region17
    $region16: #{tpu_custom_call.1} parent=1 // pred_region
      %76 = dma.done [#allocation3], 128
    $region17: #{tpu_custom_call.1} parent=1 // pred_fallthru
      _
    %77 = vsyncpa [#allocation3], 1

</llo_original>
